<compile_context>
chip_gen: v5e
topology: v5e:2x2
jax: 0.10.0
libtpu: 0.0.40
codegen_flags: <defaults>
</compile_context>

<pallas_src>
import jax
import jax.numpy as jnp
from jax import lax
from jax.experimental import pallas as pl
from jax.experimental.pallas import tpu as pltpu

_LANES = 128
_SUBLANES = 8
_MAX_BLOCK_ROWS = 512          # <= 512*128 px per grid step (~1 MiB VMEM/step)


def _ceil_div(a, b):
    return -(-a // b)


def _lovasz_kernel(tri_ref, err_ref, gt_ref, off_ref, out_ref):
    """One (image, row-chunk) step of the Lovász hinge.

    tri_ref : (128, 128) bf16 — upper-triangular 0/1 matrix (resident).
    err_ref : (1, RB, 128) f32 — hinge errors, sorted descending, zero-padded.
    gt_ref  : (1, RB, 128) bf16 — 0/1 labels in the same sorted order.
    off_ref : (1, RB, 1)  f32 — (# positives in earlier rows) - gts.
    out_ref : (1, 1, 128) f32 — per-lane partial loss, accumulated over chunks.
    """
    chunk = pl.program_id(1)

    @pl.when(chunk == 0)
    def _init():
        out_ref[...] = jnp.zeros_like(out_ref)

    f32 = jnp.float32
    e = err_ref[0]                                   # (RB, 128) f32
    g = gt_ref[0]                                    # (RB, 128) bf16
    off = off_ref[0]                                 # (RB, 1)  f32
    rb = e.shape[0]

    # Within-row inclusive cumsum of the labels: one native bf16 MXU matmul
    # against the resident triangular matrix, f32 accumulation -> exact.
    row_cum = jnp.dot(g, tri_ref[...], preferred_element_type=f32)   # (RB,128)

    # c[k] = (flat inclusive cumsum of labels up to k) - gts.  `off` carries
    # both the cross-row carry of the flat cumsum and the -gts shift, so no
    # in-kernel cross-row / cross-lane reduction is needed at all.
    c = row_cum + off                                                 # (RB,128)

    # Flat pixel index k in f32 (exact below 2^24 px): cheap (RB,1) row column
    # + (1,128) lane ramp instead of full-size int32 iotas + casts.
    lane = lax.broadcasted_iota(jnp.int32, (1, _LANES), 1).astype(f32)
    row = lax.broadcasted_iota(jnp.int32, (rb, 1), 0).astype(f32)
    base = (chunk * (rb * _LANES)).astype(f32)
    kf = base + row * float(_LANES) + lane                            # (RB,128)

    gf = g.astype(f32)

    # Lovász / Jaccard gradient, rewritten in terms of c = cum - gts:
    #   jac[k]   = 1 - (gts - cum[k]) / (gts + (k+1) - cum[k]) = 1 + c/(k+1-c)
    #   jprev[k] = jac[k-1]                                     = 1 + (c-g)/(k-c+g)
    #   grad[k]  = jac[k] - jprev[k],   with jprev[0] := 0  (grad[0] = jac[0]).
    den = (kf + 1.0) - c                   # >= 1 always -> exact, NaN-free
    jac = 1.0 + c / den
    den_p = (kf - c) + gf                  # integer-valued; 0 only at k==0 (gts==0)
    pos = den_p > 0.0
    jprev = jnp.where(pos, 1.0 + (c - gf) / jnp.where(pos, den_p, 1.0), 0.0)
    grad = jac - jprev

    # dot(relu(errors_sorted), grad), kept lane-resident (sublane reduce only).
    partial = jnp.sum(jnp.maximum(e, 0.0) * grad, axis=0, keepdims=True)
    out_ref[0] = out_ref[0] + partial


def lovasz_hinge_loss(logits, target):
    """JAX/Pallas equivalent of LovaszHingeLoss.forward (per_image=True).

    logits, target: (N, 1, H, W). Returns a scalar loss.
    """
    x = jnp.squeeze(logits, axis=1).astype(jnp.float32)   # (N, H, W)
    t = jnp.squeeze(target, axis=1).astype(jnp.float32)
    n = x.shape[0]
    p = x.shape[1] * x.shape[2]
    x = x.reshape(n, p)
    t = t.reshape(n, p)

    # Hinge errors + per-image descending sort (labels gathered by same perm).
    # TODO(synk): torch.sort / permutation gather have no clean Pallas TPU
    # equivalent; they stay in XLA (argsort / take_along_axis).
    signs = 2.0 * t - 1.0
    errors = 1.0 - x * signs
    order = jnp.argsort(-errors, axis=1)
    errors_sorted = jnp.take_along_axis(errors, order, axis=1)
    gt_sorted = jnp.take_along_axis(t, order, axis=1)

    # Row tiling: rows of 128 px, chunks of <= _MAX_BLOCK_ROWS rows.
    r0 = _ceil_div(p, _LANES)
    num_chunks = _ceil_div(r0, _MAX_BLOCK_ROWS)
    rb = _ceil_div(_ceil_div(r0, num_chunks), _SUBLANES) * _SUBLANES
    r = num_chunks * rb
    p_pad = r * _LANES
    pad = p_pad - p
    if pad:
        errors_sorted = jnp.pad(errors_sorted, ((0, 0), (0, pad)))
        gt_sorted = jnp.pad(gt_sorted, ((0, 0), (0, pad)))

    e3 = errors_sorted.reshape(n, r, _LANES)                      # f32
    g3f = gt_sorted.reshape(n, r, _LANES)

    # O(n*r) cross-row carry + total-positive count, both computed here (fused
    # by XLA into the sort pipeline) and folded into one per-row offset column:
    #   off[i, r] = (# positives in rows < r) - (total positives in image i)
    row_sums = jnp.sum(g3f, axis=2)                               # (n, r)
    gts = jnp.sum(row_sums, axis=1, keepdims=True)                # (n, 1)
    row_prefix = jnp.cumsum(row_sums, axis=1) - row_sums          # exclusive
    off3 = (row_prefix - gts).reshape(n, r, 1).astype(jnp.float32)

    g3 = g3f.astype(jnp.bfloat16)       # 0/1 labels: exact in bf16, native MXU
    ar = jnp.arange(_LANES, dtype=jnp.int32)
    tri = (ar[:, None] <= ar[None, :]).astype(jnp.bfloat16)       # (128, 128)

    cost = pl.CostEstimate(
        flops=int(n * (2 * r * _LANES * _LANES + 24 * r * _LANES)),
        transcendentals=int(2 * n * r * _LANES),          # the two divides
        bytes_accessed=int(4 * n * r * _LANES             # errors (f32)
                           + 2 * n * r * _LANES           # labels (bf16)
                           + 4 * n * r                    # row offsets
                           + 4 * n * _LANES               # output partials
                           + 2 * _LANES * _LANES))        # triangular matrix

    partials = pl.pallas_call(
        _lovasz_kernel,
        out_shape=jax.ShapeDtypeStruct((n, 1, _LANES), jnp.float32),
        grid_spec=pltpu.PrefetchScalarGridSpec(
            num_scalar_prefetch=0,
            grid=(n, num_chunks),
            in_specs=[
                pl.BlockSpec((_LANES, _LANES), lambda i, c: (0, 0)),   # resident
                pl.BlockSpec((1, rb, _LANES), lambda i, c: (i, c, 0)),
                pl.BlockSpec((1, rb, _LANES), lambda i, c: (i, c, 0)),
                pl.BlockSpec((1, rb, 1), lambda i, c: (i, c, 0)),
            ],
            out_specs=pl.BlockSpec((1, 1, _LANES), lambda i, c: (i, 0, 0)),
        ),
        compiler_params=pltpu.CompilerParams(
            dimension_semantics=("parallel", "arbitrary"),
            vmem_limit_bytes=32 * 1024 * 1024),
        cost_estimate=cost,
    )(tri, e3, g3, off3)

    per_image = jnp.sum(partials, axis=(1, 2))   # single final cross-lane reduce
    return jnp.mean(per_image)                   # per_image=True mean


def _lovasz_hinge_reference(logits, target):
    """Pure-JAX reference mirroring lovasz_hinge(per_image=True) exactly."""
    x = jnp.squeeze(logits, axis=1).astype(jnp.float32)
    t = jnp.squeeze(target, axis=1).astype(jnp.float32)
    n = x.shape[0]
    losses = []
    for i in range(n):
        log = x[i].reshape(-1)
        lab = t[i].reshape(-1)
        signs = 2.0 * lab - 1.0
        errors = 1.0 - log * signs
        order = jnp.argsort(-errors)
        errors_sorted = errors[order]
        gt_sorted = lab[order]
        gts = jnp.sum(gt_sorted)
        intersection = gts - jnp.cumsum(gt_sorted)
        union = gts + jnp.cumsum(1.0 - gt_sorted)
        jac = 1.0 - intersection / union
        grad = jnp.concatenate([jac[:1], jac[1:] - jac[:-1]])
        losses.append(jnp.sum(jnp.maximum(errors_sorted, 0.0) * grad))
    return jnp.mean(jnp.stack(losses))


if __name__ == "__main__":
    key = jax.random.PRNGKey(0)
    k1, k2 = jax.random.split(key)

    N, C, H, W = 2, 1, 16, 16   # module squeezes dim 1 -> single channel
    logits = jax.random.normal(k1, (N, C, H, W), dtype=jnp.float32)
    target = (jax.random.uniform(k2, (N, C, H, W)) > 0.5).astype(jnp.float32)

    loss_fn = jax.jit(lovasz_hinge_loss)
    out = jax.block_until_ready(loss_fn(logits, target))
    ref = jax.block_until_ready(_lovasz_hinge_reference(logits, target))
    assert jnp.allclose(out, ref, rtol=1e-5, atol=1e-5), (out, ref)

    print("KERNEL_OK")
</pallas_src>

<mosaic_0001>
module attributes {stable_mosaic.version = 11 : i64} {
  func.func @_lovasz_kernel(%arg0: i32, %arg1: i32, %arg2: memref<128x128xbf16, #tpu.memory_space<vmem>>, %arg3: memref<1x8x128xf32, #tpu.memory_space<vmem>>, %arg4: memref<1x8x128xbf16, #tpu.memory_space<vmem>>, %arg5: memref<1x8x1xf32, #tpu.memory_space<vmem>>, %arg6: memref<1x1x128xf32, #tpu.memory_space<vmem>>) attributes {dimension_semantics = [#tpu.dimension_semantics<parallel>, #tpu.dimension_semantics<arbitrary>], iteration_bounds = array<i64: 2, 1>, scalar_prefetch = 0 : i64, scratch_operands = 0 : i64, tpu.core_type = #tpu.core_type<tc>, window_params = [{pipeline_mode = #tpu.pipeline_mode<synchronous>, transform_indices = @transform_0, window_bounds = array<i64: 128, 128>}, {transform_indices = @transform_1, window_bounds = array<i64: 1, 8, 128>}, {transform_indices = @transform_2, window_bounds = array<i64: 1, 8, 128>}, {transform_indices = @transform_3, window_bounds = array<i64: 1, 8, 1>}, {transform_indices = @transform_4, window_bounds = array<i64: 1, 1, 128>}]} {
    %c0_i32 = arith.constant 0 : i32
    %0 = arith.cmpi eq, %arg1, %c0_i32 : i32
    %1 = arith.extui %0 : i1 to i32
    %c0_i32_0 = arith.constant 0 : i32
    %2 = arith.cmpi ne, %1, %c0_i32_0 : i32
    scf.if %2 {
      %cst_26 = arith.constant 0.000000e+00 : f32
      %57 = vector.broadcast %cst_26 : f32 to vector<1x1x128xf32>
      %c0_27 = arith.constant 0 : index
      %c0_28 = arith.constant 0 : index
      %c0_29 = arith.constant 0 : index
      %58 = vector.load %arg6[%c0_27, %c0_28, %c0_29] : memref<1x1x128xf32, #tpu.memory_space<vmem>>, vector<1x1x128xf32>
      tpu.vector_store %arg6[%c0_27, %c0_28, %c0_29], %57 {strides = array<i32>} : memref<1x1x128xf32, #tpu.memory_space<vmem>>, vector<1x1x128xf32>,
    } else {
    }
    %c0 = arith.constant 0 : index
    %c0_1 = arith.constant 0 : index
    %c0_2 = arith.constant 0 : index
    %3 = vector.load %arg3[%c0, %c0_1, %c0_2] : memref<1x8x128xf32, #tpu.memory_space<vmem>>, vector<1x8x128xf32>
    %4 = vector.shape_cast %3 : vector<1x8x128xf32> to vector<8x128xf32>
    %c0_3 = arith.constant 0 : index
    %c0_4 = arith.constant 0 : index
    %c0_5 = arith.constant 0 : index
    %5 = vector.load %arg4[%c0_3, %c0_4, %c0_5] : memref<1x8x128xbf16, #tpu.memory_space<vmem>>, vector<1x8x128xbf16>
    %6 = vector.shape_cast %5 : vector<1x8x128xbf16> to vector<8x128xbf16>
    %c0_6 = arith.constant 0 : index
    %c0_7 = arith.constant 0 : index
    %c0_8 = arith.constant 0 : index
    %7 = vector.load %arg5[%c0_6, %c0_7, %c0_8] : memref<1x8x1xf32, #tpu.memory_space<vmem>>, vector<1x8x1xf32>
    %8 = vector.shape_cast %7 : vector<1x8x1xf32> to vector<8x1xf32>
    %c0_9 = arith.constant 0 : index
    %c0_10 = arith.constant 0 : index
    %9 = vector.load %arg2[%c0_9, %c0_10] : memref<128x128xbf16, #tpu.memory_space<vmem>>, vector<128x128xbf16>
    %cst = arith.constant dense<0.000000e+00> : vector<8x128xf32>
    %10 = tpu.matmul %6, %9, %cst {dimension_numbers = #tpu.dot_dimension_numbers<[1], [0], [0], [1], [0, 0, 1, 1], [], []>} : vector<8x128xbf16>, vector<128x128xbf16>, vector<8x128xf32> -> vector<8x128xf32>
    %11 = vector.broadcast %8 : vector<8x1xf32> to vector<8x128xf32>
    %12 = arith.addf %10, %11 : vector<8x128xf32>
    %13 = tpu.iota {dimensions = array<i32: 1>} : vector<1x128xi32>
    %14 = arith.sitofp %13 : vector<1x128xi32> to vector<1x128xf32>
    %15 = tpu.iota {dimensions = array<i32: 0>} : vector<8x1xi32>
    %16 = arith.sitofp %15 : vector<8x1xi32> to vector<8x1xf32>
    %c1024_i32 = arith.constant 1024 : i32
    %17 = arith.muli %arg1, %c1024_i32 : i32
    %18 = arith.sitofp %17 : i32 to f32
    %cst_11 = arith.constant 1.280000e+02 : f32
    %19 = vector.broadcast %cst_11 : f32 to vector<8x1xf32>
    %20 = arith.mulf %16, %19 : vector<8x1xf32>
    %21 = vector.broadcast %18 : f32 to vector<8x1xf32>
    %22 = arith.addf %21, %20 : vector<8x1xf32>
    %23 = vector.broadcast %22 : vector<8x1xf32> to vector<8x128xf32>
    %24 = vector.broadcast %14 : vector<1x128xf32> to vector<8x128xf32>
    %25 = arith.addf %23, %24 : vector<8x128xf32>
    %26 = arith.extf %6 : vector<8x128xbf16> to vector<8x128xf32>
    %cst_12 = arith.constant 1.000000e+00 : f32
    %27 = vector.broadcast %cst_12 : f32 to vector<8x128xf32>
    %28 = arith.addf %25, %27 : vector<8x128xf32>
    %29 = arith.subf %28, %12 : vector<8x128xf32>
    %30 = arith.divf %12, %29 : vector<8x128xf32>
    %cst_13 = arith.constant 1.000000e+00 : f32
    %31 = vector.broadcast %cst_13 : f32 to vector<8x128xf32>
    %32 = arith.addf %31, %30 : vector<8x128xf32>
    %33 = arith.subf %25, %12 : vector<8x128xf32>
    %34 = arith.addf %33, %26 : vector<8x128xf32>
    %cst_14 = arith.constant 0.000000e+00 : f32
    %35 = vector.broadcast %cst_14 : f32 to vector<8x128xf32>
    %36 = arith.cmpf ogt, %34, %35 : vector<8x128xf32>
    %37 = arith.subf %12, %26 : vector<8x128xf32>
    %cst_15 = arith.constant 1.000000e+00 : f32
    %38 = vector.broadcast %cst_15 : f32 to vector<8x128xf32>
    %39 = arith.select %36, %34, %38 : vector<8x128xi1>, vector<8x128xf32>
    %40 = arith.divf %37, %39 : vector<8x128xf32>
    %cst_16 = arith.constant 1.000000e+00 : f32
    %41 = vector.broadcast %cst_16 : f32 to vector<8x128xf32>
    %42 = arith.addf %41, %40 : vector<8x128xf32>
    %cst_17 = arith.constant 0.000000e+00 : f32
    %43 = vector.broadcast %cst_17 : f32 to vector<8x128xf32>
    %44 = arith.select %36, %42, %43 : vector<8x128xi1>, vector<8x128xf32>
    %45 = arith.subf %32, %44 : vector<8x128xf32>
    %cst_18 = arith.constant 0.000000e+00 : f32
    %46 = vector.broadcast %cst_18 : f32 to vector<8x128xf32>
    %47 = arith.maximumf %4, %46 : vector<8x128xf32>
    %48 = arith.mulf %47, %45 : vector<8x128xf32>
    %cst_19 = arith.constant dense<0.000000e+00> : vector<128xf32>
    %49 = vector.multi_reduction <add>, %48, %cst_19 [0] : vector<8x128xf32> to vector<128xf32>
    %50 = vector.shape_cast %49 : vector<128xf32> to vector<1x128xf32>
    %c0_20 = arith.constant 0 : index
    %c0_21 = arith.constant 0 : index
    %c0_22 = arith.constant 0 : index
    %51 = vector.load %arg6[%c0_20, %c0_21, %c0_22] : memref<1x1x128xf32, #tpu.memory_space<vmem>>, vector<1x1x128xf32>
    %52 = vector.shape_cast %51 : vector<1x1x128xf32> to vector<1x128xf32>
    %53 = arith.addf %52, %50 : vector<1x128xf32>
    %c0_23 = arith.constant 0 : index
    %c0_24 = arith.constant 0 : index
    %c0_25 = arith.constant 0 : index
    %54 = vector.load %arg6[%c0_23, %c0_24, %c0_25] : memref<1x1x128xf32, #tpu.memory_space<vmem>>, vector<1x1x128xf32>
    %55 = vector.shape_cast %54 : vector<1x1x128xf32> to vector<1x128xf32>
    %56 = vector.shape_cast %53 : vector<1x128xf32> to vector<1x1x128xf32>
    tpu.vector_store %arg6[%c0_23, %c0_24, %c0_25], %56 {strides = array<i32>} : memref<1x1x128xf32, #tpu.memory_space<vmem>>, vector<1x1x128xf32>,
    return
  }
  func.func @transform_0(%arg0: i32, %arg1: i32) -> (i32, i32) {
    %c0_i32 = arith.constant 0 : i32
    %c0_i32_0 = arith.constant 0 : i32
    %c0_i32_1 = arith.constant 0 : i32
    return %c0_i32, %c0_i32_0 : i32, i32
  }
  func.func @transform_1(%arg0: i32, %arg1: i32) -> (i32, i32, i32) {
    %c0_i32 = arith.constant 0 : i32
    %c0_i32_0 = arith.constant 0 : i32
    return %arg0, %arg1, %c0_i32 : i32, i32, i32
  }
  func.func @transform_2(%arg0: i32, %arg1: i32) -> (i32, i32, i32) {
    %c0_i32 = arith.constant 0 : i32
    %c0_i32_0 = arith.constant 0 : i32
    return %arg0, %arg1, %c0_i32 : i32, i32, i32
  }
  func.func @transform_3(%arg0: i32, %arg1: i32) -> (i32, i32, i32) {
    %c0_i32 = arith.constant 0 : i32
    %c0_i32_0 = arith.constant 0 : i32
    return %arg0, %arg1, %c0_i32 : i32, i32, i32
  }
  func.func @transform_4(%arg0: i32, %arg1: i32) -> (i32, i32, i32) {
    %c0_i32 = arith.constant 0 : i32
    %c0_i32_0 = arith.constant 0 : i32
    %c0_i32_1 = arith.constant 0 : i32
    return %arg0, %c0_i32, %c0_i32_0 : i32, i32, i32
  }
}

</mosaic_0001>

<llo_original>
// kernel: squeeze.2
$region0: #{squeeze.2}
  %s0 = inlined_call_operand.vmem [shape: f32[2,1,16,16], index: 0, kind: input, shape index: {}]
  %s1 = inlined_call_operand.vmem [shape: f32[2,256], index: 1, kind: output, shape index: {}]
  $region1: #{squeeze.2} parent=0
    #allocation0 [shape = 'u8[8192]{0}', space=vmem, size = 0x2000, scoped, tag = 'scoped mem for output reshape']
    %v2 = vld [vmem:[%s0] ss:$8 sm:$0xf]
    %vm3 = vcmask 130048
    %4 = vst.msk [vmem:[#allocation0] ss:$8 sm:$0x3] %vm3, %v2
    %s5 = scalar_lea.vmem [#allocation0], 4294967281
    %6 = vst.msk [vmem:[%s5] ss:$8 sm:$0xc] %vm3, %v2
    %s7 = scalar_lea.vmem %s0, 7
    %s8 = smov 3
    %v9 = vld [vmem:[%s7] ss:$16 sm:%s8]
    %s10 = scalar_lea.vmem %s0, 4294967279
    %s11 = smov 12
    %v12 = vld [vmem:[%s10] ss:$16 sm:%s11]
    %vm13 = vcmask 1043458
    %v14 = vsel %vm13, %v12, %v9
    %15 = vrot.lane.b32.xlu0 %v14, 112
    %v16 = vpop.permute.xlu0 %15
    %vm17 = vcmask 1048448
    %18 = vst.msk [vmem:[#allocation0] sm:$0x3] %vm17, %v16
    %s19 = scalar_lea.vmem [#allocation0], 6
    %20 = vst.msk [vmem:[%s19] sm:$0xc] %vm17, %v16
    %s21 = scalar_lea.vmem %s0, 6
    %s22 = smov 3
    %v23 = vld [vmem:[%s21] ss:$16 sm:%s22]
    %s24 = scalar_lea.vmem %s0, 4294967278
    %s25 = smov 12
    %v26 = vld [vmem:[%s24] ss:$16 sm:%s25]
    %vm27 = vcmask 1043458
    %v28 = vsel %vm27, %v26, %v23
    %29 = vrot.lane.b32.xlu0 %v28, 96
    %v30 = vpop.permute.xlu0 %29
    %vm31 = vcmask 917248
    %32 = vst.msk [vmem:[#allocation0] sm:$0x3] %vm31, %v30
    %s33 = scalar_lea.vmem [#allocation0], 6
    %34 = vst.msk [vmem:[%s33] sm:$0xc] %vm31, %v30
    %s35 = scalar_lea.vmem %s0, 5
    %s36 = smov 3
    %v37 = vld [vmem:[%s35] ss:$16 sm:%s36]
    %s38 = scalar_lea.vmem %s0, 4294967277
    %s39 = smov 12
    %v40 = vld [vmem:[%s38] ss:$16 sm:%s39]
    %vm41 = vcmask 1043458
    %v42 = vsel %vm41, %v40, %v37
    %43 = vrot.lane.b32.xlu0 %v42, 80
    %v44 = vpop.permute.xlu0 %43
    %vm45 = vcmask 786048
    %46 = vst.msk [vmem:[#allocation0] sm:$0x3] %vm45, %v44
    %s47 = scalar_lea.vmem [#allocation0], 6
    %48 = vst.msk [vmem:[%s47] sm:$0xc] %vm45, %v44
    %s49 = scalar_lea.vmem %s0, 4
    %s50 = smov 3
    %v51 = vld [vmem:[%s49] ss:$16 sm:%s50]
    %s52 = scalar_lea.vmem %s0, 4294967276
    %s53 = smov 12
    %v54 = vld [vmem:[%s52] ss:$16 sm:%s53]
    %vm55 = vcmask 1043458
    %v56 = vsel %vm55, %v54, %v51
    %57 = vrot.lane.b32.xlu0 %v56, 64
    %v58 = vpop.permute.xlu0 %57
    %vm59 = vcmask 654848
    %60 = vst.msk [vmem:[#allocation0] sm:$0x3] %vm59, %v58
    %s61 = scalar_lea.vmem [#allocation0], 6
    %62 = vst.msk [vmem:[%s61] sm:$0xc] %vm59, %v58
    %s63 = scalar_lea.vmem %s0, 3
    %s64 = smov 3
    %v65 = vld [vmem:[%s63] ss:$16 sm:%s64]
    %s66 = scalar_lea.vmem %s0, 4294967275
    %s67 = smov 12
    %v68 = vld [vmem:[%s66] ss:$16 sm:%s67]
    %vm69 = vcmask 1043458
    %v70 = vsel %vm69, %v68, %v65
    %71 = vrot.lane.b32.xlu0 %v70, 48
    %v72 = vpop.permute.xlu0 %71
    %vm73 = vcmask 523648
    %74 = vst.msk [vmem:[#allocation0] sm:$0x3] %vm73, %v72
    %s75 = scalar_lea.vmem [#allocation0], 6
    %76 = vst.msk [vmem:[%s75] sm:$0xc] %vm73, %v72
    %s77 = scalar_lea.vmem %s0, 2
    %s78 = smov 3
    %v79 = vld [vmem:[%s77] ss:$16 sm:%s78]
    %s80 = scalar_lea.vmem %s0, 4294967274
    %s81 = smov 12
    %v82 = vld [vmem:[%s80] ss:$16 sm:%s81]
    %vm83 = vcmask 1043458
    %v84 = vsel %vm83, %v82, %v79
    %85 = vrot.lane.b32.xlu0 %v84, 32
    %v86 = vpop.permute.xlu0 %85
    %vm87 = vcmask 392448
    %88 = vst.msk [vmem:[#allocation0] sm:$0x3] %vm87, %v86
    %s89 = scalar_lea.vmem [#allocation0], 6
    %90 = vst.msk [vmem:[%s89] sm:$0xc] %vm87, %v86
    %s91 = scalar_lea.vmem %s0, 1
    %s92 = smov 3
    %v93 = vld [vmem:[%s91] ss:$16 sm:%s92]
    %s94 = scalar_lea.vmem %s0, 4294967273
    %s95 = smov 12
    %v96 = vld [vmem:[%s94] ss:$16 sm:%s95]
    %vm97 = vcmask 1043458
    %v98 = vsel %vm97, %v96, %v93
    %99 = vrot.lane.b32.xlu0 %v98, 16
    %v100 = vpop.permute.xlu0 %99
    %vm101 = vcmask 261248
    %102 = vst.msk [vmem:[#allocation0] sm:$0x3] %vm101, %v100
    %s103 = scalar_lea.vmem [#allocation0], 6
    %104 = vst.msk [vmem:[%s103] sm:$0xc] %vm101, %v100
    %s106 = ssub.s32 4, 1
    %v107 = vld [vmem:[#allocation0] sm:%s106]
    %s109 = ssub.s32 4, 1
    %110 = vst [vmem:[%s1] sm:%s109] %v107
    %s111 = scalar_lea.vmem [#allocation0], 8
    %v112 = vld [vmem:[%s111] sm:%s106]
    %s114 = ssub.s32 4, 1
    %s115 = scalar_lea.vmem %s1, 2
    %116 = vst [vmem:[%s115] sm:%s114] %v112

// kernel: squeeze.3
$region0: #{squeeze.3}
  %s0 = inlined_call_operand.hbm [shape: f32[2,1,16,16], index: 0, kind: input, shape index: {}]
  %s1 = inlined_call_operand.vmem [shape: f32[2,256], index: 1, kind: output, shape index: {}]
  $region1: #{squeeze.3} parent=0
    #allocation0 [shape = 'u8[16384]{0}', space=vmem, size = 0x4000, scoped, tag = 'operand span for operand 0']
    #allocation1 [shape = 's32[1]{0}', space=sflag, size = 0x4, scoped, tag = 'scoped memory for squeeze.3']
    #allocation2 [shape = 'u8[8192]{0}', space=vmem, size = 0x2000, scoped, tag = 'scoped mem for output reshape']
    %2 = vsyncpa [#allocation1], 0
    %4 = vsyncadd [#allocation1], 0
    %s6 = sshll.u32 %s0, 4
    %s7 = int_to_ptr.hbm [resolvable:$true] %s6
    %s8 = sshll.u32 [#allocation0], 4
    %s9 = int_to_ptr.vmem [resolvable:$true] %s8
    %11 = dma.hbm_to_vmem [thread:$0]  %s7, 512, %s9, [#allocation1]
    %13 = dma.done [#allocation1], 512
    %v14 = vld [vmem:[#allocation0] ss:$8 sm:$0xf]
    %vm15 = vcmask 130048
    %16 = vst.msk [vmem:[#allocation2] ss:$8 sm:$0x3] %vm15, %v14
    %s17 = scalar_lea.vmem [#allocation2], 4294967281
    %18 = vst.msk [vmem:[%s17] ss:$8 sm:$0xc] %vm15, %v14
    %s19 = scalar_lea.vmem [#allocation0], 7
    %s20 = smov 3
    %v21 = vld [vmem:[%s19] ss:$16 sm:%s20]
    %s22 = scalar_lea.vmem [#allocation0], 4294967279
    %s23 = smov 12
    %v24 = vld [vmem:[%s22] ss:$16 sm:%s23]
    %vm25 = vcmask 1043458
    %v26 = vsel %vm25, %v24, %v21
    %27 = vrot.lane.b32.xlu0 %v26, 112
    %v28 = vpop.permute.xlu0 %27
    %vm29 = vcmask 1048448
    %30 = vst.msk [vmem:[#allocation2] sm:$0x3] %vm29, %v28
    %s31 = scalar_lea.vmem [#allocation2], 6
    %32 = vst.msk [vmem:[%s31] sm:$0xc] %vm29, %v28
    %s33 = scalar_lea.vmem [#allocation0], 6
    %s34 = smov 3
    %v35 = vld [vmem:[%s33] ss:$16 sm:%s34]
    %s36 = scalar_lea.vmem [#allocation0], 4294967278
    %s37 = smov 12
    %v38 = vld [vmem:[%s36] ss:$16 sm:%s37]
    %vm39 = vcmask 1043458
    %v40 = vsel %vm39, %v38, %v35
    %41 = vrot.lane.b32.xlu0 %v40, 96
    %v42 = vpop.permute.xlu0 %41
    %vm43 = vcmask 917248
    %44 = vst.msk [vmem:[#allocation2] sm:$0x3] %vm43, %v42
    %s45 = scalar_lea.vmem [#allocation2], 6
    %46 = vst.msk [vmem:[%s45] sm:$0xc] %vm43, %v42
    %s47 = scalar_lea.vmem [#allocation0], 5
    %s48 = smov 3
    %v49 = vld [vmem:[%s47] ss:$16 sm:%s48]
    %s50 = scalar_lea.vmem [#allocation0], 4294967277
    %s51 = smov 12
    %v52 = vld [vmem:[%s50] ss:$16 sm:%s51]
    %vm53 = vcmask 1043458
    %v54 = vsel %vm53, %v52, %v49
    %55 = vrot.lane.b32.xlu0 %v54, 80
    %v56 = vpop.permute.xlu0 %55
    %vm57 = vcmask 786048
    %58 = vst.msk [vmem:[#allocation2] sm:$0x3] %vm57, %v56
    %s59 = scalar_lea.vmem [#allocation2], 6
    %60 = vst.msk [vmem:[%s59] sm:$0xc] %vm57, %v56
    %s61 = scalar_lea.vmem [#allocation0], 4
    %s62 = smov 3
    %v63 = vld [vmem:[%s61] ss:$16 sm:%s62]
    %s64 = scalar_lea.vmem [#allocation0], 4294967276
    %s65 = smov 12
    %v66 = vld [vmem:[%s64] ss:$16 sm:%s65]
    %vm67 = vcmask 1043458
    %v68 = vsel %vm67, %v66, %v63
    %69 = vrot.lane.b32.xlu0 %v68, 64
    %v70 = vpop.permute.xlu0 %69
    %vm71 = vcmask 654848
    %72 = vst.msk [vmem:[#allocation2] sm:$0x3] %vm71, %v70
    %s73 = scalar_lea.vmem [#allocation2], 6
    %74 = vst.msk [vmem:[%s73] sm:$0xc] %vm71, %v70
    %s75 = scalar_lea.vmem [#allocation0], 3
    %s76 = smov 3
    %v77 = vld [vmem:[%s75] ss:$16 sm:%s76]
    %s78 = scalar_lea.vmem [#allocation0], 4294967275
    %s79 = smov 12
    %v80 = vld [vmem:[%s78] ss:$16 sm:%s79]
    %vm81 = vcmask 1043458
    %v82 = vsel %vm81, %v80, %v77
    %83 = vrot.lane.b32.xlu0 %v82, 48
    %v84 = vpop.permute.xlu0 %83
    %vm85 = vcmask 523648
    %86 = vst.msk [vmem:[#allocation2] sm:$0x3] %vm85, %v84
    %s87 = scalar_lea.vmem [#allocation2], 6
    %88 = vst.msk [vmem:[%s87] sm:$0xc] %vm85, %v84
    %s89 = scalar_lea.vmem [#allocation0], 2
    %s90 = smov 3
    %v91 = vld [vmem:[%s89] ss:$16 sm:%s90]
    %s92 = scalar_lea.vmem [#allocation0], 4294967274
    %s93 = smov 12
    %v94 = vld [vmem:[%s92] ss:$16 sm:%s93]
    %vm95 = vcmask 1043458
    %v96 = vsel %vm95, %v94, %v91
    %97 = vrot.lane.b32.xlu0 %v96, 32
    %v98 = vpop.permute.xlu0 %97
    %vm99 = vcmask 392448
    %100 = vst.msk [vmem:[#allocation2] sm:$0x3] %vm99, %v98
    %s101 = scalar_lea.vmem [#allocation2], 6
    %102 = vst.msk [vmem:[%s101] sm:$0xc] %vm99, %v98
    %s103 = scalar_lea.vmem [#allocation0], 1
    %s104 = smov 3
    %v105 = vld [vmem:[%s103] ss:$16 sm:%s104]
    %s106 = scalar_lea.vmem [#allocation0], 4294967273
    %s107 = smov 12
    %v108 = vld [vmem:[%s106] ss:$16 sm:%s107]
    %vm109 = vcmask 1043458
    %v110 = vsel %vm109, %v108, %v105
    %111 = vrot.lane.b32.xlu0 %v110, 16
    %v112 = vpop.permute.xlu0 %111
    %vm113 = vcmask 261248
    %114 = vst.msk [vmem:[#allocation2] sm:$0x3] %vm113, %v112
    %s115 = scalar_lea.vmem [#allocation2], 6
    %116 = vst.msk [vmem:[%s115] sm:$0xc] %vm113, %v112
    %s118 = ssub.s32 4, 1
    %v119 = vld [vmem:[#allocation2] sm:%s118]
    %s121 = ssub.s32 4, 1
    %122 = vst [vmem:[%s1] sm:%s121] %v119
    %s123 = scalar_lea.vmem [#allocation2], 8
    %v124 = vld [vmem:[%s123] sm:%s118]
    %s126 = ssub.s32 4, 1
    %s127 = scalar_lea.vmem %s1, 2
    %128 = vst [vmem:[%s127] sm:%s126] %v124
    %129 = vsyncpa [#allocation1], 1

// kernel: lovasz_hinge_loss.1
$region0: #{lovasz_hinge_loss.1}
  #allocation0 [shape = 'u32[]', space=smem, size = 0x4, offset = 0x4, fixed_abs, tag = 'smem constant byte address 0x4 - core index']
  #allocation1 [shape = 'u32[72,128]{1,0:T(1,128)}', space=vmem, size = 0x9000, scoped, tag = 'internal scratch']
  %s0 = inlined_call_operand.vmem [shape: bf16[128,128], index: 0, kind: input, shape index: {}]
  %s1 = inlined_call_operand.vmem [shape: f32[2,8,128], index: 1, kind: input, shape index: {}]
  %s2 = inlined_call_operand.vmem [shape: bf16[2,8,128], index: 2, kind: input, shape index: {}]
  %s3 = inlined_call_operand.vmem [shape: f32[2,8,1], index: 3, kind: input, shape index: {}]
  %s4 = inlined_call_operand.vmem [shape: f32[2,1,128], index: 4, kind: output, shape index: {}]
  %s5 = sld [smem:[#allocation0]]
  $region53: #{lovasz_hinge_loss.1} parent=0
    _
  %s7 = ssub.s32 1, %s5
  %s8 = scalar_select 0, %s7, %s5
  loop: start=0, step=1, limit=4
  $region2: #{lovasz_hinge_loss.1} parent=0 // loop_pre_header
    _
  $region3: #{lovasz_hinge_loss.1} parent=0 // loop_header
    %s10 = sphi 0, %s14
    %p11 = scmp.ge.s32.totalorder %s10, 4
    %s17 = sphi 0, %s29
    %s18 = sphi 0, %s25
    %s19 = sphi 0, %s17
    %s20 = sphi 0, %s18
    %s21 = sphi 0, %s19
    %s22 = sphi 0, %s20
    %s30 = sphi 0, %s30
    %s32 = sphi 0, %s30
    %s33 = sphi 0, %s32
    %s47 = sphi 0, %s33
    %s55 = sphi 0, %s57
    %s58 = sphi 0, %s55
    %s59 = sphi 0, %s58
    %s75 = sphi 0, %s59
    %s83 = sphi 0, %s85
    %s86 = sphi 0, %s83
    %s87 = sphi 0, %s86
    %s103 = sphi 0, %s87
    %s111 = sphi 0, %s113
    %s114 = sphi 0, %s111
    %s115 = sphi 0, %s114
    %s131 = sphi 0, %s115
    %s137 = sphi 0, %s139
    %s140 = sphi 0, %s137
    %s141 = sphi 0, %s140
    %s157 = sphi 0, %s141
  $region4: #{lovasz_hinge_loss.1} parent=0 // loop_header_branch
    %13 = sbr.rel (%p11) target = $region8
  $region5: #{lovasz_hinge_loss.1} parent=0 // loop_body
    %s15 = ssub.s32 %s10, 1
    %s16 = ssub.s32 %s10, 2
    %s23 = sadd.s32 1, %s18
    %p24 = scmp.ge.s32.totalorder %s23, 1
    %s25 = scalar_select %p24, 0, %s23
    %s26 = sadd.s32 1, %s17
    %s27 = scalar_select %p24, %s26, %s17
    %p28 = scmp.ge.s32.totalorder %s27, 2
    %s29 = scalar_select %p28, 0, %s27
    %s31 = sadd.s32 %s30, 1
    %p34 = scmp.eq.s32.totalorder %s10, 1
    %p35 = scmp.ne.s32.totalorder %s30, %s32
    %p36 = scmp.eq.s32.totalorder %s10, 0
    %p37 = por %p35, %p36
    %p38 = scmp.ne.s32.totalorder %s30, %s32
    %p39 = scmp.eq.s32.totalorder %s15, 1
    %p40 = por %p38, %p39
    %p41 = scmp.ne.s32.totalorder %s32, %s33
    %p42 = scmp.eq.s32.totalorder %s15, 0
    %p43 = por %p41, %p42
    %p44 = scmp.ne.s32.totalorder %s32, %s33
    %p45 = scmp.eq.s32.totalorder %s16, 1
    %p46 = por %p44, %p45
    %p48 = scmp.ne.s32.totalorder %s33, %s47
    %p49 = scmp.eq.s32.totalorder %s16, 0
    %p50 = por %p48, %p49
    %s51 = ssub.s32 %s17, %s29
    %s52 = ssub.s32 %s18, %s25
    %s53 = sor.u32 %s51, %s52
    %p54 = scmp.eq.s32.totalorder %s53, 0
    %s56 = sadd.s32 %s55, 1
    %s57 = scalar_select %p54, %s55, %s56
    %p60 = pneg %p54
    %p61 = scmp.eq.s32.totalorder %s10, 1
    %p62 = por %p60, %p61
    %p63 = scmp.ne.s32.totalorder %s55, %s58
    %p64 = scmp.eq.s32.totalorder %s10, 0
    %p65 = por %p63, %p64
    %p66 = scmp.ne.s32.totalorder %s55, %s58
    %p67 = scmp.eq.s32.totalorder %s15, 1
    %p68 = por %p66, %p67
    %p69 = scmp.ne.s32.totalorder %s58, %s59
    %p70 = scmp.eq.s32.totalorder %s15, 0
    %p71 = por %p69, %p70
    %p72 = scmp.ne.s32.totalorder %s58, %s59
    %p73 = scmp.eq.s32.totalorder %s16, 1
    %p74 = por %p72, %p73
    %p76 = scmp.ne.s32.totalorder %s59, %s75
    %p77 = scmp.eq.s32.totalorder %s16, 0
    %p78 = por %p76, %p77
    %s79 = ssub.s32 %s17, %s29
    %s80 = ssub.s32 %s18, %s25
    %s81 = sor.u32 %s79, %s80
    %p82 = scmp.eq.s32.totalorder %s81, 0
    %s84 = sadd.s32 %s83, 1
    %s85 = scalar_select %p82, %s83, %s84
    %p88 = pneg %p82
    %p89 = scmp.eq.s32.totalorder %s10, 1
    %p90 = por %p88, %p89
    %p91 = scmp.ne.s32.totalorder %s83, %s86
    %p92 = scmp.eq.s32.totalorder %s10, 0
    %p93 = por %p91, %p92
    %p94 = scmp.ne.s32.totalorder %s83, %s86
    %p95 = scmp.eq.s32.totalorder %s15, 1
    %p96 = por %p94, %p95
    %p97 = scmp.ne.s32.totalorder %s86, %s87
    %p98 = scmp.eq.s32.totalorder %s15, 0
    %p99 = por %p97, %p98
    %p100 = scmp.ne.s32.totalorder %s86, %s87
    %p101 = scmp.eq.s32.totalorder %s16, 1
    %p102 = por %p100, %p101
    %p104 = scmp.ne.s32.totalorder %s87, %s103
    %p105 = scmp.eq.s32.totalorder %s16, 0
    %p106 = por %p104, %p105
    %s107 = ssub.s32 %s17, %s29
    %s108 = ssub.s32 %s18, %s25
    %s109 = sor.u32 %s107, %s108
    %p110 = scmp.eq.s32.totalorder %s109, 0
    %s112 = sadd.s32 %s111, 1
    %s113 = scalar_select %p110, %s111, %s112
    %p116 = pneg %p110
    %p117 = scmp.eq.s32.totalorder %s10, 1
    %p118 = por %p116, %p117
    %p119 = scmp.ne.s32.totalorder %s111, %s114
    %p120 = scmp.eq.s32.totalorder %s10, 0
    %p121 = por %p119, %p120
    %p122 = scmp.ne.s32.totalorder %s111, %s114
    %p123 = scmp.eq.s32.totalorder %s15, 1
    %p124 = por %p122, %p123
    %p125 = scmp.ne.s32.totalorder %s114, %s115
    %p126 = scmp.eq.s32.totalorder %s15, 0
    %p127 = por %p125, %p126
    %p128 = scmp.ne.s32.totalorder %s114, %s115
    %p129 = scmp.eq.s32.totalorder %s16, 1
    %p130 = por %p128, %p129
    %p132 = scmp.ne.s32.totalorder %s115, %s131
    %p133 = scmp.eq.s32.totalorder %s16, 0
    %p134 = por %p132, %p133
    %s135 = ssub.s32 %s17, %s29
    %p136 = scmp.eq.s32.totalorder %s135, 0
    %s138 = sadd.s32 %s137, 1
    %s139 = scalar_select %p136, %s137, %s138
    %p142 = pneg %p136
    %p143 = scmp.eq.s32.totalorder %s10, 1
    %p144 = por %p142, %p143
    %p145 = scmp.ne.s32.totalorder %s137, %s140
    %p146 = scmp.eq.s32.totalorder %s10, 0
    %p147 = por %p145, %p146
    %p148 = scmp.ne.s32.totalorder %s137, %s140
    %p149 = scmp.eq.s32.totalorder %s15, 1
    %p150 = por %p148, %p149
    %p151 = scmp.ne.s32.totalorder %s140, %s141
    %p152 = scmp.eq.s32.totalorder %s15, 0
    %p153 = por %p151, %p152
    %p154 = scmp.ne.s32.totalorder %s140, %s141
    %p155 = scmp.eq.s32.totalorder %s16, 1
    %p156 = por %p154, %p155
    %p158 = scmp.ne.s32.totalorder %s141, %s157
    %p159 = scmp.eq.s32.totalorder %s16, 0
    %p160 = por %p158, %p159
    %p161 = scmp.le.s32.totalorder 1, %s10
    %p162 = scmp.lt.s32.totalorder %s10, 3
    %p163 = pnand %p161, %p162
    %p164 = pneg %p163
    // Predicated region
    $region9: #{lovasz_hinge_loss.1} parent=5 // pred_check
      _
    $region10: #{lovasz_hinge_loss.1} parent=5 // pred_check_branch
      %166 = sbr.rel (%p163) target = $region12
    $region11: #{lovasz_hinge_loss.1} parent=5 // pred_region
      %s167 = ssub.s32 %s10, 1
      // Predicated region
      $region13: #{lovasz_hinge_loss.1} parent=11 // pred_check
        %p168 = pneg %p43
      $region14: #{lovasz_hinge_loss.1} parent=11 // pred_check_branch
        %170 = sbr.rel (%p168) target = $region16
      $region15: #{lovasz_hinge_loss.1} parent=11 // pred_region
        _
      $region16: #{lovasz_hinge_loss.1} parent=11 // pred_fallthru
        _
    $region12: #{lovasz_hinge_loss.1} parent=5 // pred_fallthru
      _
    %p171 = scmp.lt.s32.totalorder %s10, 2
    // Predicated region
    $region17: #{lovasz_hinge_loss.1} parent=5 // pred_check
      %p172 = pneg %p171
    $region18: #{lovasz_hinge_loss.1} parent=5 // pred_check_branch
      %174 = sbr.rel (%p172) target = $region20
    $region19: #{lovasz_hinge_loss.1} parent=5 // pred_region
      // Predicated region
      $region21: #{lovasz_hinge_loss.1} parent=19 // pred_check
        %p175 = pneg %p65
      $region22: #{lovasz_hinge_loss.1} parent=19 // pred_check_branch
        %177 = sbr.rel (%p175) target = $region24
      $region23: #{lovasz_hinge_loss.1} parent=19 // pred_region
        %p178 = scmp.lt.s32.totalorder %s17, 1
        %s179 = scalar_select %p178, %s17, 1
        %p180 = scmp.lt.s32.totalorder %s18, 0
        %s181 = scalar_select %p180, %s18, 0
        %s182 = sadd.s32 %s181, %s179
        %s183 = smul.addr %s182, 8
        %s184 = scalar_lea.vmem %s1, %s183
      $region24: #{lovasz_hinge_loss.1} parent=19 // pred_fallthru
        _
      // Predicated region
      $region25: #{lovasz_hinge_loss.1} parent=19 // pred_check
        %p185 = pneg %p93
      $region26: #{lovasz_hinge_loss.1} parent=19 // pred_check_branch
        %187 = sbr.rel (%p185) target = $region28
      $region27: #{lovasz_hinge_loss.1} parent=19 // pred_region
        %p188 = scmp.lt.s32.totalorder %s17, 1
        %s189 = scalar_select %p188, %s17, 1
        %p190 = scmp.lt.s32.totalorder %s18, 0
        %s191 = scalar_select %p190, %s18, 0
        %s192 = sadd.s32 %s191, %s189
        %s193 = smul.addr %s192, 4
        %s194 = scalar_lea.vmem %s2, %s193
      $region28: #{lovasz_hinge_loss.1} parent=19 // pred_fallthru
        _
      // Predicated region
      $region29: #{lovasz_hinge_loss.1} parent=19 // pred_check
        %p195 = pneg %p121
      $region30: #{lovasz_hinge_loss.1} parent=19 // pred_check_branch
        %197 = sbr.rel (%p195) target = $region32
      $region31: #{lovasz_hinge_loss.1} parent=19 // pred_region
        %p198 = scmp.lt.s32.totalorder %s17, 1
        %s199 = scalar_select %p198, %s17, 1
        %p200 = scmp.lt.s32.totalorder %s18, 0
        %s201 = scalar_select %p200, %s18, 0
        %s202 = sadd.s32 %s201, %s199
        %s203 = smul.addr %s202, 8
        %s204 = scalar_lea.vmem %s3, %s203
      $region32: #{lovasz_hinge_loss.1} parent=19 // pred_fallthru
        _
    $region20: #{lovasz_hinge_loss.1} parent=5 // pred_fallthru
      _
    %p205 = scmp.le.s32.totalorder 1, %s10
    %p206 = scmp.lt.s32.totalorder %s10, 3
    %p207 = pnand %p205, %p206
    %p208 = pneg %p207
    // Predicated region
    $region33: #{lovasz_hinge_loss.1} parent=5 // pred_check
      _
    $region34: #{lovasz_hinge_loss.1} parent=5 // pred_check_branch
      %210 = sbr.rel (%p207) target = $region36
    $region35: #{lovasz_hinge_loss.1} parent=5 // pred_region
      %s211 = ssub.s32 %s10, 1
      %p212 = pneg %p43
      %p213 = pneg %p40
      %p214 = scmp.lt.s32.totalorder %s19, 1
      %s215 = scalar_select %p214, %s19, 1
      %p216 = scmp.lt.s32.totalorder %s20, 0
      %s217 = scalar_select %p216, %s20, 0
      %s218 = sadd.s32 %s217, %s215
      %s219 = smul.addr %s218, 8
      %s220 = scalar_lea.vmem %s1, %s219
      %p221 = pneg %p71
      %p222 = pneg %p68
      %p223 = scmp.lt.s32.totalorder %s19, 1
      %s224 = scalar_select %p223, %s19, 1
      %p225 = scmp.lt.s32.totalorder %s20, 0
      %s226 = scalar_select %p225, %s20, 0
      %s227 = sadd.s32 %s226, %s224
      %s228 = smul.addr %s227, 4
      %s229 = scalar_lea.vmem %s2, %s228
      %p230 = pneg %p99
      %p231 = pneg %p96
      %p232 = scmp.lt.s32.totalorder %s19, 1
      %s233 = scalar_select %p232, %s19, 1
      %p234 = scmp.lt.s32.totalorder %s20, 0
      %s235 = scalar_select %p234, %s20, 0
      %s236 = sadd.s32 %s235, %s233
      %s237 = smul.addr %s236, 8
      %s238 = scalar_lea.vmem %s3, %s237
      %p239 = pneg %p127
      %p240 = pneg %p124
      %p241 = pneg %p153
      %p242 = pneg %p150
      %p243 = scmp.lt.s32.totalorder %s19, 1
      %s244 = scalar_select %p243, %s19, 1
      %s245 = scalar_lea.vmem %s4, %s244
      %p246 = scmp.lt.s32.totalorder %s19, 1
      %s247 = scalar_select %p246, %s19, 1
      %p248 = scmp.lt.s32.totalorder %s20, 0
      %s249 = scalar_select %p248, %s20, 0
      %s250 = sadd.s32 %s249, %s247
      %s251 = smul.addr %s250, 8
      %s252 = scalar_lea.vmem %s1, %s251
      %p253 = scmp.lt.s32.totalorder %s19, 1
      %s254 = scalar_select %p253, %s19, 1
      %p255 = scmp.lt.s32.totalorder %s20, 0
      %s256 = scalar_select %p255, %s20, 0
      %s257 = sadd.s32 %s256, %s254
      %s258 = smul.addr %s257, 4
      %s259 = scalar_lea.vmem %s2, %s258
      %p260 = scmp.lt.s32.totalorder %s19, 1
      %s261 = scalar_select %p260, %s19, 1
      %p262 = scmp.lt.s32.totalorder %s20, 0
      %s263 = scalar_select %p262, %s20, 0
      %s264 = sadd.s32 %s263, %s261
      %s265 = smul.addr %s264, 8
      %s266 = scalar_lea.vmem %s3, %s265
      %p267 = scmp.lt.s32.totalorder %s19, 1
      %s268 = scalar_select %p267, %s19, 1
      %s269 = scalar_lea.vmem %s4, %s268
      %p270 = scmp.eq.s32.totalorder %s20, 0
      // Predicated region
      $region37: #{lovasz_hinge_loss.1} parent=35 // pred_check
        %p271 = pneg %p270
      $region38: #{lovasz_hinge_loss.1} parent=35 // pred_check_branch
        %273 = sbr.rel (%p271) target = $region40
      $region39: #{lovasz_hinge_loss.1} parent=35 // pred_region
        %274 = vst [vmem:[%s269] sm:$0x1] 0.0
      $region40: #{lovasz_hinge_loss.1} parent=35 // pred_fallthru
        _
      %v275 = vld [vmem:[%s252] sm:$0xff]
      %v276 = vld [vmem:[%s259] sm:$0xf]
      %v277 = vld [vmem:[%s266] sm:$0xff]
      %v278 = vld [vmem:[%s0] sm:$0xf]
      %v279 = vld [vmem:[%s0 + $0x4] sm:$0xf]
      %v280 = vld [vmem:[%s0 + $0x8] sm:$0xf]
      %v281 = vld [vmem:[%s0 + $0xc] sm:$0xf]
      %v282 = vld [vmem:[%s0 + $0x10] sm:$0xf]
      %v283 = vld [vmem:[%s0 + $0x14] sm:$0xf]
      %v284 = vld [vmem:[%s0 + $0x18] sm:$0xf]
      %v285 = vld [vmem:[%s0 + $0x1c] sm:$0xf]
      %v286 = vld [vmem:[%s0 + $0x20] sm:$0xf]
      %v287 = vld [vmem:[%s0 + $0x24] sm:$0xf]
      %v288 = vld [vmem:[%s0 + $0x28] sm:$0xf]
      %v289 = vld [vmem:[%s0 + $0x2c] sm:$0xf]
      %v290 = vld [vmem:[%s0 + $0x30] sm:$0xf]
      %v291 = vld [vmem:[%s0 + $0x34] sm:$0xf]
      %v292 = vld [vmem:[%s0 + $0x38] sm:$0xf]
      %v293 = vld [vmem:[%s0 + $0x3c] sm:$0xf]
      %295 = vset.pattern.permute.xlu0 0
      %296 = vperm.xlu0 %295, %v277
      %v297 = vpop.permute.xlu0 %296
      %v315 = vunpack.c.l.b16 %v278
      %v316 = vunpack.c.l.b16 %v279
      %v317 = vunpack.c.l.b16 %v280
      %v318 = vunpack.c.l.b16 %v281
      %v319 = vunpack.c.l.b16 %v282
      %v320 = vunpack.c.l.b16 %v283
      %v321 = vunpack.c.l.b16 %v284
      %v322 = vunpack.c.l.b16 %v285
      %v323 = vunpack.c.l.b16 %v286
      %v324 = vunpack.c.l.b16 %v287
      %v325 = vunpack.c.l.b16 %v288
      %v326 = vunpack.c.l.b16 %v289
      %v327 = vunpack.c.l.b16 %v290
      %v328 = vunpack.c.l.b16 %v291
      %v329 = vunpack.c.l.b16 %v292
      %v330 = vunpack.c.l.b16 %v293
      %v331 = vpack.c.b16 %v316, %v315
      %v332 = vpack.c.b16 %v318, %v317
      %v333 = vpack.c.b16 %v320, %v319
      %v334 = vpack.c.b16 %v322, %v321
      %v335 = vpack.c.b16 %v324, %v323
      %v336 = vpack.c.b16 %v326, %v325
      %v337 = vpack.c.b16 %v328, %v327
      %v338 = vpack.c.b16 %v330, %v329
      %347 = vmatpush.bf16.msra.mxu0 %v338
      %348 = vmatpush.bf16.msra.mxu0 %v337
      %349 = vmatpush.bf16.msra.mxu0 %v336
      %350 = vmatpush.bf16.msra.mxu0 %v335
      %351 = vmatpush.bf16.msra.mxu0 %v334
      %352 = vmatpush.bf16.msra.mxu0 %v333
      %353 = vmatpush.bf16.msra.mxu0 %v332
      %354 = vmatpush.bf16.msra.mxu0 %v331
      %355 = vmatmul.bf16.gmra.mxu0 %v276
      %v356 = vpop.f32.mrf.mxu0
      %v357 = vadd.f32 %v297, %v356
      %v358 = vpop.f32.mrf.mxu0
      %359 = vdwg.mxu0
      %v360 = vlaneseq
      %v361 = vand.u32 %v360, 127
      %v362 = vcvt.s32.f32 %v361
      %v363 = vlaneseq
      %v364 = vshrl.u32 %v363, 7
      %v365 = vcvt.s32.f32 %v364
      %s366 = smul.u32 %s20, 1024
      %s367 = scvt.s32.f32 %s366
      %v368 = vmul.f32 %v365, 128.0
      %v369 = vstv %s367
      %v370 = vadd.f32 %v369, %v368
      %v371 = vadd.f32 %v370, %v362
      %v372 = vunpack.c.l.bf16 %v276
      %v373 = vadd.f32 %v371, 1.0
      %v374 = vsub.f32 %v373, %v357
      %v375 = vrcp.pop %v374
      %v376 = vmul.f32 %v374, %v375
      %v377 = vsub.f32 1.0, %v376
      %v378 = vmul.f32 %v375, %v377
      %v379 = vadd.f32 %v375, %v378
      %vm380 = vweird.f32 %v374
      %vm381 = vweird.f32 %v375
      %vm382 = vmor %vm380, %vm381
      %v383 = vsel %vm382, %v375, %v379
      %v384 = vand.u32 2147483647, %v374
      %vm385 = vcmp.eq.f32.partialorder %v384, 8.507059e+37
      %v386 = vand.u32 %v374, 2147483648
      %v387 = vor.u32 1.1754944e-38, %v386
      %v388 = vsel %vm385, %v387, %v383
      %v389 = vmul.f32 %v357, %v388
      %v390 = vadd.f32 %v389, 1.0
      %v391 = vsub.f32 %v371, %v357
      %v392 = vadd.f32 %v391, %v372
      %vm393 = vcmp.gt.f32.partialorder %v392, 0.0
      %v394 = vsub.f32 %v357, %v372
      %v395 = vsel %vm393, %v392, 1.0
      %v396 = vrcp.pop %v395
      %v397 = vmul.f32 %v395, %v396
      %v398 = vsub.f32 1.0, %v397
      %v399 = vmul.f32 %v396, %v398
      %v400 = vadd.f32 %v396, %v399
      %vm401 = vweird.f32 %v395
      %vm402 = vweird.f32 %v396
      %vm403 = vmor %vm401, %vm402
      %v404 = vsel %vm403, %v396, %v400
      %v405 = vand.u32 2147483647, %v395
      %vm406 = vcmp.eq.f32.partialorder %v405, 8.507059e+37
      %v407 = vand.u32 %v395, 2147483648
      %v408 = vor.u32 1.1754944e-38, %v407
      %v409 = vsel %vm406, %v408, %v404
      %v410 = vmul.f32 %v394, %v409
      %v411 = vadd.f32 %v410, 1.0
      %v412 = vsel %vm393, %v411, 0.0
      %v413 = vsub.f32 %v390, %v412
      %v414 = vmax.f32 %v275, 0.0
      %v415 = vmul.f32 %v414, %v413
      %v416 = vrot.slane %v415, 4
      %v417 = vadd.f32 %v415, %v416
      %v418 = vrot.slane %v417, 2
      %v419 = vadd.f32 %v417, %v418
      %v420 = vrot.slane %v419, 1
      %v421 = vadd.f32 %v419, %v420
      %v422 = vld [vmem:[%s269] sm:$0x1]
      %v423 = vadd.f32 %v422, %v421
      %424 = vst [vmem:[%s269] sm:$0x1] %v423
      %p425 = scmp.lt.s32.totalorder %s19, 1
      %s426 = scalar_select %p425, %s19, 1
      %s427 = scalar_lea.vmem %s4, %s426
      // Predicated region
      $region41: #{lovasz_hinge_loss.1} parent=35 // pred_check
        %p428 = pneg %p150
      $region42: #{lovasz_hinge_loss.1} parent=35 // pred_check_branch
        %430 = sbr.rel (%p428) target = $region44
      $region43: #{lovasz_hinge_loss.1} parent=35 // pred_region
        _
      $region44: #{lovasz_hinge_loss.1} parent=35 // pred_fallthru
        _
    $region36: #{lovasz_hinge_loss.1} parent=5 // pred_fallthru
      _
    %p431 = scmp.le.s32.totalorder 2, %s10
    // Predicated region
    $region45: #{lovasz_hinge_loss.1} parent=5 // pred_check
      %p432 = pneg %p431
    $region46: #{lovasz_hinge_loss.1} parent=5 // pred_check_branch
      %434 = sbr.rel (%p432) target = $region48
    $region47: #{lovasz_hinge_loss.1} parent=5 // pred_region
      %s435 = ssub.s32 %s10, 2
      // Predicated region
      $region49: #{lovasz_hinge_loss.1} parent=47 // pred_check
        %p436 = pneg %p156
      $region50: #{lovasz_hinge_loss.1} parent=47 // pred_check_branch
        %438 = sbr.rel (%p436) target = $region52
      $region51: #{lovasz_hinge_loss.1} parent=47 // pred_region
        %p439 = scmp.lt.s32.totalorder %s21, 1
        %s440 = scalar_select %p439, %s21, 1
        %s441 = scalar_lea.vmem %s4, %s440
      $region52: #{lovasz_hinge_loss.1} parent=47 // pred_fallthru
        _
    $region48: #{lovasz_hinge_loss.1} parent=5 // pred_fallthru
      _
  $region6: #{lovasz_hinge_loss.1} parent=0 // loop_footer
    %s14 = sadd.s32 1, %s10
  $region7: #{lovasz_hinge_loss.1} parent=0 // loop_footer_branch
    %9 = sbr.rel target = $region3
  $region8: #{lovasz_hinge_loss.1} parent=0 // loop_exit
    _

</llo_original>
